<compile_context>
chip_gen: v5e
topology: v5e:2x2
jax: 0.10.0
libtpu: 0.0.40
codegen_flags: <defaults>
</compile_context>

<pallas_src>
import functools

import jax
import jax.numpy as jnp
from jax.experimental import pallas as pl
from jax.experimental.pallas import tpu as pltpu

_SUBLANE = 8  # f32 sublane granularity for the tiled batch axis


def _round_up(x: int, m: int) -> int:
    return ((x + m - 1) // m) * m


def _qnet_kernel(x_ref, w1_ref, b1_ref, w2_ref, b2_ref, o_ref):
    # layer1 on the MXU: cast activations to the weight dtype (bf16 fast path),
    # accumulate in f32.
    x = x_ref[...].astype(w1_ref.dtype)
    h = jnp.dot(x, w1_ref[...], preferred_element_type=jnp.float32)
    # bias add + ReLU in f32 (safe on v5e: no bf16 VPU required).
    h = jnp.maximum(h + b1_ref[...], 0.0)
    # layer2: cast hidden activations to the weight dtype, accumulate in f32.
    out = jnp.dot(h.astype(w2_ref.dtype), w2_ref[...],
                  preferred_element_type=jnp.float32)
    o_ref[...] = (out + b2_ref[...]).astype(o_ref.dtype)


@functools.partial(jax.jit, static_argnames=("block_b",))
def linear_qnet_forward(x, w1, b1, w2, b2, *, block_b=1024):
    """relu(x @ w1 + b1) @ w2 + b2, returned in x.dtype.

    x:  (B, n_inputs)
    w1: (n_inputs, n_hidden)   already transposed vs. torch Linear.weight
    b1: (1, n_hidden) float32  (see prepare_params)
    w2: (n_hidden, n_outputs)
    b2: (1, n_outputs) float32
    """
    B, n_inputs = x.shape
    n_hidden = w1.shape[1]
    n_outputs = w2.shape[1]

    # Tolerate un-prepared 1-D biases (static-shape reshape, no-op for prepared params).
    if b1.ndim == 1:
        b1 = b1.reshape(1, n_hidden)
    if b2.ndim == 1:
        b2 = b2.reshape(1, n_outputs)

    # Batch tile: multiple of 8 sublanes, capped at block_b, and no larger than
    # ceil(B/2) (rounded up to 8) so the parallel batch axis gives both v7x
    # TensorCores work whenever B permits.  Ragged last block is masked by Pallas.
    tb = max(_SUBLANE, min(block_b, _round_up(pl.cdiv(B, 2), _SUBLANE)))
    grid = (pl.cdiv(B, tb),)

    return pl.pallas_call(
        _qnet_kernel,
        out_shape=jax.ShapeDtypeStruct((B, n_outputs), x.dtype),
        grid_spec=pltpu.PrefetchScalarGridSpec(
            num_scalar_prefetch=0,
            grid=grid,
            in_specs=[
                # activations: one (tb, n_inputs) tile per grid step; last dim equals
                # the full array dim so no lane padding is needed.
                pl.BlockSpec((tb, n_inputs), lambda i: (i, 0)),
                # weights / biases: constant block index -> DMA'd once, VMEM-resident.
                pl.BlockSpec((n_inputs, n_hidden), lambda i: (0, 0)),
                pl.BlockSpec((1, n_hidden), lambda i: (0, 0)),
                pl.BlockSpec((n_hidden, n_outputs), lambda i: (0, 0)),
                pl.BlockSpec((1, n_outputs), lambda i: (0, 0)),
            ],
            out_specs=pl.BlockSpec((tb, n_outputs), lambda i: (i, 0)),
        ),
        compiler_params=pltpu.CompilerParams(
            # batch axis is independent -> shard across TensorCores on v7x megacore
            dimension_semantics=("parallel",),
        ),
    )(x, w1, b1, w2, b2)


def prepare_params(w1, b1, w2, b2, compute_dtype=jnp.bfloat16):
    """One-time parameter prep (out of the per-call path): cast weights to the MXU
    compute dtype (bf16 by default -> half the weight DMA bytes on all generations)
    and reshape biases to (1, n) f32 rows for in-kernel broadcast."""
    return (w1.astype(compute_dtype),
            b1.reshape(1, -1).astype(jnp.float32),
            w2.astype(compute_dtype),
            b2.reshape(1, -1).astype(jnp.float32))


def init_params(key, n_inputs, n_hidden, n_outputs):
    """Deterministic init matching torch.nn.Linear's uniform(-1/sqrt(fan_in), 1/sqrt(fan_in))."""
    k1, k2, k3, k4 = jax.random.split(key, 4)
    bound1 = 1.0 / jnp.sqrt(n_inputs)
    bound2 = 1.0 / jnp.sqrt(n_hidden)
    # Stored already transposed: (in, out)
    w1 = jax.random.uniform(k1, (n_inputs, n_hidden), jnp.float32, -bound1, bound1)
    b1 = jax.random.uniform(k2, (n_hidden,), jnp.float32, -bound1, bound1)
    w2 = jax.random.uniform(k3, (n_hidden, n_outputs), jnp.float32, -bound2, bound2)
    b2 = jax.random.uniform(k4, (n_outputs,), jnp.float32, -bound2, bound2)
    return w1, b1, w2, b2


if __name__ == "__main__":
    # Shapes consistent with the Q-network forward: batch of state vectors.
    n_inputs, n_hidden, n_outputs = 16, 32, 4

    key = jax.random.PRNGKey(0)
    kx, kp, kb = jax.random.split(key, 3)
    w1, b1, w2, b2 = init_params(kp, n_inputs, n_hidden, n_outputs)

    # --- f32 path (tight tolerance): validates kernel structure exactly ---------
    w1f, b1f, w2f, b2f = prepare_params(w1, b1, w2, b2, compute_dtype=jnp.float32)

    B_small = 8
    x_small = jax.random.normal(kx, (B_small, n_inputs), dtype=jnp.float32)
    out_small = jax.block_until_ready(linear_qnet_forward(x_small, w1f, b1f, w2f, b2f))
    ref_small = jnp.maximum(x_small @ w1 + b1, 0.0) @ w2 + b2
    assert out_small.shape == (B_small, n_outputs)
    assert out_small.dtype == x_small.dtype
    assert jnp.allclose(out_small, ref_small, atol=1e-5, rtol=1e-5)

    B_big = 1000  # exercises >= 2 grid steps and a masked ragged last block
    x_big = jax.random.normal(kb, (B_big, n_inputs), dtype=jnp.float32)
    out_big = jax.block_until_ready(linear_qnet_forward(x_big, w1f, b1f, w2f, b2f))
    ref_big = jnp.maximum(x_big @ w1 + b1, 0.0) @ w2 + b2
    assert out_big.shape == (B_big, n_outputs)
    assert jnp.allclose(out_big, ref_big, atol=1e-5, rtol=1e-5)

    # --- default bf16 path (loose tolerance, expected bf16 rounding only) --------
    w1h, b1h, w2h, b2h = prepare_params(w1, b1, w2, b2)  # bf16 weights, f32 biases
    out_bf16 = jax.block_until_ready(linear_qnet_forward(x_big, w1h, b1h, w2h, b2h))
    assert out_bf16.shape == (B_big, n_outputs)
    assert out_bf16.dtype == x_big.dtype
    assert jnp.allclose(out_bf16, ref_big, atol=1e-1, rtol=1e-1)

    print("KERNEL_OK")
</pallas_src>

<mosaic_0001>
module attributes {stable_mosaic.version = 11 : i64} {
  func.func @_qnet_kernel(%arg0: i32, %arg1: memref<8x16xf32, #tpu.memory_space<vmem>>, %arg2: memref<16x32xf32, #tpu.memory_space<vmem>>, %arg3: memref<1x32xf32, #tpu.memory_space<vmem>>, %arg4: memref<32x4xf32, #tpu.memory_space<vmem>>, %arg5: memref<1x4xf32, #tpu.memory_space<vmem>>, %arg6: memref<8x4xf32, #tpu.memory_space<vmem>>) attributes {dimension_semantics = [#tpu.dimension_semantics<parallel>], iteration_bounds = array<i64: 1>, scalar_prefetch = 0 : i64, scratch_operands = 0 : i64, tpu.core_type = #tpu.core_type<tc>, window_params = [{transform_indices = @transform_0, window_bounds = array<i64: 8, 16>}, {pipeline_mode = #tpu.pipeline_mode<synchronous>, transform_indices = @transform_1, window_bounds = array<i64: 16, 32>}, {pipeline_mode = #tpu.pipeline_mode<synchronous>, transform_indices = @transform_2, window_bounds = array<i64: 1, 32>}, {pipeline_mode = #tpu.pipeline_mode<synchronous>, transform_indices = @transform_3, window_bounds = array<i64: 32, 4>}, {pipeline_mode = #tpu.pipeline_mode<synchronous>, transform_indices = @transform_4, window_bounds = array<i64: 1, 4>}, {transform_indices = @transform_5, window_bounds = array<i64: 8, 4>}]} {
    %c0 = arith.constant 0 : index
    %c0_0 = arith.constant 0 : index
    %0 = vector.load %arg1[%c0, %c0_0] : memref<8x16xf32, #tpu.memory_space<vmem>>, vector<8x16xf32>
    %c0_1 = arith.constant 0 : index
    %c0_2 = arith.constant 0 : index
    %1 = vector.load %arg2[%c0_1, %c0_2] : memref<16x32xf32, #tpu.memory_space<vmem>>, vector<16x32xf32>
    %cst = arith.constant dense<0.000000e+00> : vector<8x32xf32>
    %2 = tpu.matmul %0, %1, %cst {dimension_numbers = #tpu.dot_dimension_numbers<[1], [0], [0], [1], [0, 0, 1, 1], [], []>} : vector<8x16xf32>, vector<16x32xf32>, vector<8x32xf32> -> vector<8x32xf32>
    %c0_3 = arith.constant 0 : index
    %c0_4 = arith.constant 0 : index
    %3 = vector.load %arg3[%c0_3, %c0_4] : memref<1x32xf32, #tpu.memory_space<vmem>>, vector<1x32xf32>
    %4 = vector.broadcast %3 : vector<1x32xf32> to vector<8x32xf32>
    %5 = arith.addf %2, %4 : vector<8x32xf32>
    %cst_5 = arith.constant 0.000000e+00 : f32
    %6 = vector.broadcast %cst_5 : f32 to vector<8x32xf32>
    %7 = arith.maximumf %5, %6 : vector<8x32xf32>
    %c0_6 = arith.constant 0 : index
    %c0_7 = arith.constant 0 : index
    %8 = vector.load %arg4[%c0_6, %c0_7] : memref<32x4xf32, #tpu.memory_space<vmem>>, vector<32x4xf32>
    %cst_8 = arith.constant dense<0.000000e+00> : vector<8x4xf32>
    %9 = tpu.matmul %7, %8, %cst_8 {dimension_numbers = #tpu.dot_dimension_numbers<[1], [0], [0], [1], [0, 0, 1, 1], [], []>} : vector<8x32xf32>, vector<32x4xf32>, vector<8x4xf32> -> vector<8x4xf32>
    %c0_9 = arith.constant 0 : index
    %c0_10 = arith.constant 0 : index
    %10 = vector.load %arg5[%c0_9, %c0_10] : memref<1x4xf32, #tpu.memory_space<vmem>>, vector<1x4xf32>
    %11 = vector.broadcast %10 : vector<1x4xf32> to vector<8x4xf32>
    %12 = arith.addf %9, %11 : vector<8x4xf32>
    %c0_11 = arith.constant 0 : index
    %c0_12 = arith.constant 0 : index
    %13 = vector.load %arg6[%c0_11, %c0_12] : memref<8x4xf32, #tpu.memory_space<vmem>>, vector<8x4xf32>
    tpu.vector_store %arg6[%c0_11, %c0_12], %12 {strides = array<i32>} : memref<8x4xf32, #tpu.memory_space<vmem>>, vector<8x4xf32>,
    return
  }
  func.func @transform_0(%arg0: i32) -> (i32, i32) {
    %c0_i32 = arith.constant 0 : i32
    %c0_i32_0 = arith.constant 0 : i32
    return %arg0, %c0_i32 : i32, i32
  }
  func.func @transform_1(%arg0: i32) -> (i32, i32) {
    %c0_i32 = arith.constant 0 : i32
    %c0_i32_0 = arith.constant 0 : i32
    %c0_i32_1 = arith.constant 0 : i32
    return %c0_i32, %c0_i32_0 : i32, i32
  }
  func.func @transform_2(%arg0: i32) -> (i32, i32) {
    %c0_i32 = arith.constant 0 : i32
    %c0_i32_0 = arith.constant 0 : i32
    %c0_i32_1 = arith.constant 0 : i32
    return %c0_i32, %c0_i32_0 : i32, i32
  }
  func.func @transform_3(%arg0: i32) -> (i32, i32) {
    %c0_i32 = arith.constant 0 : i32
    %c0_i32_0 = arith.constant 0 : i32
    %c0_i32_1 = arith.constant 0 : i32
    return %c0_i32, %c0_i32_0 : i32, i32
  }
  func.func @transform_4(%arg0: i32) -> (i32, i32) {
    %c0_i32 = arith.constant 0 : i32
    %c0_i32_0 = arith.constant 0 : i32
    %c0_i32_1 = arith.constant 0 : i32
    return %c0_i32, %c0_i32_0 : i32, i32
  }
  func.func @transform_5(%arg0: i32) -> (i32, i32) {
    %c0_i32 = arith.constant 0 : i32
    %c0_i32_0 = arith.constant 0 : i32
    return %arg0, %c0_i32 : i32, i32
  }
}

</mosaic_0001>

<llo_original>
// kernel: linear_qnet_forward.1
$region0: #{linear_qnet_forward.1}
  #allocation0 [shape = 'u32[]', space=smem, size = 0x4, offset = 0x4, fixed_abs, tag = 'smem constant byte address 0x4 - core index']
  #allocation1 [shape = 'u32[72,128]{1,0:T(1,128)}', space=vmem, size = 0x9000, scoped, tag = 'internal scratch']
  %s0 = inlined_call_operand.vmem [shape: f32[8,16], index: 0, kind: input, shape index: {}]
  %s1 = inlined_call_operand.vmem [shape: f32[16,32], index: 1, kind: input, shape index: {}]
  %s2 = inlined_call_operand.vmem [shape: f32[1,32], index: 2, kind: input, shape index: {}]
  %s3 = inlined_call_operand.vmem [shape: f32[32,4], index: 3, kind: input, shape index: {}]
  %s4 = inlined_call_operand.vmem [shape: f32[1,4], index: 4, kind: input, shape index: {}]
  %s5 = inlined_call_operand.vmem [shape: f32[8,4], index: 5, kind: output, shape index: {}]
  %s6 = sld [smem:[#allocation0]]
  $region30: #{linear_qnet_forward.1} parent=0
    _
  %s8 = ssub.s32 1, %s6
  %s9 = scalar_select 0, %s8, %s6
  // Predicated region
  $region2: #{linear_qnet_forward.1} parent=0 // pred_check
    _
  $region3: #{linear_qnet_forward.1} parent=0 // pred_check_branch
    %11 = sbr.rel (0) target = $region5
  $region4: #{linear_qnet_forward.1} parent=0 // pred_region
    _
  $region5: #{linear_qnet_forward.1} parent=0 // pred_fallthru
    _
  // Predicated region
  $region6: #{linear_qnet_forward.1} parent=0 // pred_check
    _
  $region7: #{linear_qnet_forward.1} parent=0 // pred_check_branch
    %13 = sbr.rel (0) target = $region9
  $region8: #{linear_qnet_forward.1} parent=0 // pred_region
    _
  $region9: #{linear_qnet_forward.1} parent=0 // pred_fallthru
    _
  // Predicated region
  $region10: #{linear_qnet_forward.1} parent=0 // pred_check
    _
  $region11: #{linear_qnet_forward.1} parent=0 // pred_check_branch
    %15 = sbr.rel (0) target = $region13
  $region12: #{linear_qnet_forward.1} parent=0 // pred_region
    _
  $region13: #{linear_qnet_forward.1} parent=0 // pred_fallthru
    _
  // Predicated region
  $region14: #{linear_qnet_forward.1} parent=0 // pred_check
    _
  $region15: #{linear_qnet_forward.1} parent=0 // pred_check_branch
    %17 = sbr.rel (0) target = $region17
  $region16: #{linear_qnet_forward.1} parent=0 // pred_region
    _
  $region17: #{linear_qnet_forward.1} parent=0 // pred_fallthru
    _
  // Predicated region
  $region18: #{linear_qnet_forward.1} parent=0 // pred_check
    _
  $region19: #{linear_qnet_forward.1} parent=0 // pred_check_branch
    %19 = sbr.rel (0) target = $region21
  $region20: #{linear_qnet_forward.1} parent=0 // pred_region
    _
  $region21: #{linear_qnet_forward.1} parent=0 // pred_fallthru
    _
  %v20 = vld [vmem:[%s0] sm:$0xff]
  %v21 = vld [vmem:[%s1] sm:$0xff]
  %v22 = vld [vmem:[%s1 + $0x8] sm:$0xff]
  %v23 = vld [vmem:[%s2] sm:$0x1]
  %v25 = vperm.slane %v23, 0
  %vm27 = vcmask 130048
  %v29 = vsel %vm27, %v20, 0
  %31 = vmatpush.msra.mxu0 0.0
  %32 = vmatpush.msra.mxu0 0.0
  %33 = vmatpush.msra.mxu0 0.0
  %34 = vmatpush.msra.mxu0 0.0
  %35 = vmatpush.msra.mxu0 0.0
  %36 = vmatpush.msra.mxu0 0.0
  %37 = vmatpush.msra.mxu0 0.0
  %38 = vmatpush.msra.mxu0 0.0
  %39 = vmatpush.msra.mxu0 0.0
  %40 = vmatpush.msra.mxu0 0.0
  %41 = vmatpush.msra.mxu0 0.0
  %42 = vmatpush.msra.mxu0 0.0
  %43 = vmatpush.msra.mxu0 0.0
  %44 = vmatpush.msra.mxu0 0.0
  %45 = vmatpush.msra.mxu0 %v22
  %46 = vmatpush.msra.mxu0 %v21
  %47 = vmatmul.f32.gmra.mxu0 %v29
  %v48 = vpop.f32.mrf.mxu0
  %v49 = vadd.f32 %v25, %v48
  %50 = vdwg.mxu0
  %v51 = vmax.f32 %v49, 0.0
  %v52 = vld [vmem:[%s3] sm:$0xff]
  %v53 = vld [vmem:[%s3 + $0x8] sm:$0xff]
  %v54 = vld [vmem:[%s3 + $0x10] sm:$0xff]
  %v55 = vld [vmem:[%s3 + $0x18] sm:$0xff]
  %v56 = vld [vmem:[%s4] sm:$0x1]
  %v58 = vperm.slane %v56, 0
  %vm60 = vcmask 261120
  %v62 = vsel %vm60, %v51, 0
  %64 = vmatpush.msra.mxu0 0.0
  %65 = vmatpush.msra.mxu0 0.0
  %66 = vmatpush.msra.mxu0 0.0
  %67 = vmatpush.msra.mxu0 0.0
  %68 = vmatpush.msra.mxu0 0.0
  %69 = vmatpush.msra.mxu0 0.0
  %70 = vmatpush.msra.mxu0 0.0
  %71 = vmatpush.msra.mxu0 0.0
  %72 = vmatpush.msra.mxu0 0.0
  %73 = vmatpush.msra.mxu0 0.0
  %74 = vmatpush.msra.mxu0 0.0
  %75 = vmatpush.msra.mxu0 0.0
  %76 = vmatpush.msra.mxu0 %v55
  %77 = vmatpush.msra.mxu0 %v54
  %78 = vmatpush.msra.mxu0 %v53
  %79 = vmatpush.msra.mxu0 %v52
  %80 = vmatmul.f32.gmra.mxu0 %v62
  %v81 = vpop.f32.mrf.mxu0
  %v82 = vadd.f32 %v58, %v81
  %83 = vdwg.mxu0
  %vm84 = vcmask 31744
  %85 = vst.msk [vmem:[%s5] sm:$0xff] %vm84, %v82
  // Predicated region
  $region22: #{linear_qnet_forward.1} parent=0 // pred_check
    _
  $region23: #{linear_qnet_forward.1} parent=0 // pred_check_branch
    %87 = sbr.rel (0) target = $region25
  $region24: #{linear_qnet_forward.1} parent=0 // pred_region
    _
  $region25: #{linear_qnet_forward.1} parent=0 // pred_fallthru
    _
  // Predicated region
  $region26: #{linear_qnet_forward.1} parent=0 // pred_check
    _
  $region27: #{linear_qnet_forward.1} parent=0 // pred_check_branch
    %89 = sbr.rel (0) target = $region29
  $region28: #{linear_qnet_forward.1} parent=0 // pred_region
    _
  $region29: #{linear_qnet_forward.1} parent=0 // pred_fallthru
    _

</llo_original>
